<compile_context>
chip_gen: v5e
topology: v5e:2x2
jax: 0.10.0
libtpu: 0.0.40
codegen_flags: <defaults>
</compile_context>

<pallas_src>
import functools

import jax
import jax.numpy as jnp
from jax.experimental import pallas as pl
from jax.experimental.pallas import tpu as pltpu

# CustomTanh bounds: min/max of an MNIST image normalized by (0.1307, 0.3081)
MIN_VAL = (0.0 - 0.1307) / 0.3081
MAX_VAL = (1.0 - 0.1307) / 0.3081


def generator_kernel(x_ref, w_ref, b_ref, dec_ref, p_ref, *,
                     n_dec, n_groups, p_ch):
    """One grid step = one batch image; channels on sublanes, pixels on lanes.

    x_ref  : (Cin, H*W)                  input pixels of this image
    w_ref  : (n_dec + n_groups*p_ch, Cin) fused decoder + p_layer weights
    b_ref  : (n_dec + n_groups*p_ch, 1)   fused biases
    dec_ref: (n_dec, H*W)                CustomTanh(ConvT_dec(z)), rows=(ki,kj,o)
    p_ref  : (n_groups*p_ch, H*W)        softmax(sigmoid(ConvT_p(z))), rows=(ki,kj,o)
    """
    x = x_ref[...]                                   # (Cin, HW)
    hw = x.shape[-1]

    # One fused MXU matmul for BOTH deconv branches + lane-broadcast bias add.
    acc = jnp.dot(w_ref[...], x, preferred_element_type=jnp.float32)
    acc = acc + b_ref[...]                           # (n_dec + n_p, HW)

    # ---- decoder branch: ConvTranspose2d -> CustomTanh (one full-width store)
    dec = acc[:n_dec, :]                             # sublane-aligned slice
    dec_ref[...] = ((jnp.tanh(dec) + 1.0) * ((MAX_VAL - MIN_VAL) * 0.5)
                    + MIN_VAL).astype(dec_ref.dtype)

    # ---- p branch: ConvTranspose2d -> Sigmoid -> per-pixel channel softmax.
    # sigmoid output lies in (0, 1), so exp() is numerically safe WITHOUT the
    # usual max-subtraction (saves an XLU reduction + VPU subtract per group).
    s = jax.nn.sigmoid(acc[n_dec:, :])               # (n_groups*p_ch, HW)
    e = jnp.exp(s.reshape(n_groups, p_ch, hw))       # groups of p_ch sublanes
    denom = jnp.sum(e, axis=1, keepdims=True)        # 8-deep sublane reduction
    p = e * pl.reciprocal(denom, approx=True)        # EUP reciprocal (own slot)
    p_ref[...] = p.reshape(n_groups * p_ch, hw).astype(p_ref.dtype)


def generator_forward(z, w_dec, b_dec, w_p, b_p):
    """z: (N, C, H, W) float32 (NCHW, as in PyTorch).

    Returns (x_recon, p) with PyTorch shapes:
      x_recon: (N, C,  2H, 2W)
      p      : (N, 2C, 2H, 2W)
    """
    N, C, H, W = z.shape
    K = 2                        # kernel_size == stride == 2
    c_dec = C                    # decoder out channels
    c_p = 2 * C                  # p_layer out channels (k = 2)
    n_groups = K * K
    n_dec = n_groups * c_dec     # 16
    n_p = n_groups * c_p         # 32
    HW = H * W

    # ---- glue (free): NCHW -> (N, Cin, H*W); pixels land on the lane axis.
    x = z.reshape(N, C, HW)

    # ---- fuse + pre-transpose weights: rows ordered (branch, ki, kj, o).
    # PyTorch ConvTranspose2d weight layout is (in_channels, out_channels, kH, kW).
    wdec_t = jnp.transpose(w_dec, (2, 3, 1, 0)).reshape(n_dec, C)
    wp_t = jnp.transpose(w_p, (2, 3, 1, 0)).reshape(n_p, C)
    w_comb = jnp.concatenate([wdec_t, wp_t], axis=0)            # (48, Cin)
    b_comb = jnp.concatenate([jnp.tile(b_dec, (n_groups,)),
                              jnp.tile(b_p, (n_groups,))]
                             ).reshape(n_dec + n_p, 1)          # (48, 1)

    kernel = functools.partial(generator_kernel, n_dec=n_dec,
                               n_groups=n_groups, p_ch=c_p)

    # NOTE(v6e/v7x): outputs could be narrowed to bf16 at the store to halve
    # writeback traffic if downstream tolerates it; kept f32 here to match the
    # PyTorch module exactly.
    dec_flat, p_flat = pl.pallas_call(
        kernel,
        out_shape=(
            jax.ShapeDtypeStruct((N, n_dec, HW), z.dtype),
            jax.ShapeDtypeStruct((N, n_p, HW), z.dtype),
        ),
        grid_spec=pltpu.PrefetchScalarGridSpec(
            num_scalar_prefetch=0,
            grid=(N,),                                   # 2 parallel steps
            in_specs=[
                pl.BlockSpec((None, C, HW), lambda n: (n, 0, 0)),
                pl.BlockSpec((n_dec + n_p, C), lambda n: (0, 0)),
                pl.BlockSpec((n_dec + n_p, 1), lambda n: (0, 0)),
            ],
            out_specs=[
                pl.BlockSpec((None, n_dec, HW), lambda n: (n, 0, 0)),
                pl.BlockSpec((None, n_p, HW), lambda n: (n, 0, 0)),
            ],
        ),
        compiler_params=pltpu.CompilerParams(
            dimension_semantics=("parallel",)),
    )(x, w_comb, b_comb)

    # ---- glue: interleave the 2x2 output blocks back to NCHW ----------------
    # rows of *_flat are (ki, kj, o); cols are (i, j).
    def to_nchw(flat, cout):
        y = flat.reshape(N, K, K, cout, H, W)            # (n, ki, kj, o, i, j)
        y = jnp.transpose(y, (0, 3, 4, 1, 5, 2))         # (n, o, i, ki, j, kj)
        return y.reshape(N, cout, H * K, W * K)

    return to_nchw(dec_flat, c_dec), to_nchw(p_flat, c_p)


# ---- pure-JAX reference (for sanity check only) ------------------------------
def reference_forward(z, w_dec, b_dec, w_p, b_p):
    def convT(zz, w, b):
        y = jnp.einsum('ncij,cokl->noikjl', zz, w)       # (N, O, H, ki, W, kj)
        n, o, h, kh, ww, kw = y.shape
        return y.reshape(n, o, h * kh, ww * kw) + b[None, :, None, None]

    dec = convT(z, w_dec, b_dec)
    x_recon = (jnp.tanh(dec) + 1.0) * (MAX_VAL - MIN_VAL) / 2.0 + MIN_VAL
    p = jax.nn.sigmoid(convT(z, w_p, b_p))
    p = jax.nn.softmax(p, axis=1)
    return x_recon, p


if __name__ == "__main__":
    # small shapes consistent with the module: batch=2, channels_img=4, 16x16
    N, C, H, W = 2, 4, 16, 16
    K = 2

    key = jax.random.PRNGKey(0)
    k1, k2, k3, k4, k5 = jax.random.split(key, 5)

    # deterministic parameter init (PyTorch ConvTranspose2d weight layout:
    #   (in_channels, out_channels, kH, kW))
    bound = 1.0 / jnp.sqrt(C * K * K)
    w_dec = jax.random.uniform(k1, (C, C, K, K), jnp.float32, -bound, bound)
    b_dec = jax.random.uniform(k2, (C,), jnp.float32, -bound, bound)
    w_p = jax.random.uniform(k3, (C, 2 * C, K, K), jnp.float32, -bound, bound)
    b_p = jax.random.uniform(k4, (2 * C,), jnp.float32, -bound, bound)

    z = jax.random.normal(k5, (N, C, H, W), jnp.float32)

    fwd = jax.jit(generator_forward)
    x_recon, p = jax.block_until_ready(fwd(z, w_dec, b_dec, w_p, b_p))

    # sanity check against plain-JAX reference
    x_expected, p_expected = reference_forward(z, w_dec, b_dec, w_p, b_p)
    assert x_recon.shape == (N, C, 2 * H, 2 * W)
    assert p.shape == (N, 2 * C, 2 * H, 2 * W)
    assert jnp.allclose(x_recon, x_expected, atol=1e-5, rtol=1e-5)
    # softmax uses the EUP approximate reciprocal -> slightly looser tolerance
    assert jnp.allclose(p, p_expected, atol=2e-3, rtol=2e-3)

    print("KERNEL_OK")
</pallas_src>

<mosaic_0001>
module attributes {stable_mosaic.version = 11 : i64} {
  func.func @generator_kernel(%arg0: i32, %arg1: memref<1x4x256xf32, #tpu.memory_space<vmem>>, %arg2: memref<48x4xf32, #tpu.memory_space<vmem>>, %arg3: memref<48x1xf32, #tpu.memory_space<vmem>>, %arg4: memref<1x16x256xf32, #tpu.memory_space<vmem>>, %arg5: memref<1x32x256xf32, #tpu.memory_space<vmem>>) attributes {dimension_semantics = [#tpu.dimension_semantics<parallel>], iteration_bounds = array<i64: 2>, scalar_prefetch = 0 : i64, scratch_operands = 0 : i64, tpu.core_type = #tpu.core_type<tc>, window_params = [{transform_indices = @transform_0, window_bounds = array<i64: 1, 4, 256>}, {pipeline_mode = #tpu.pipeline_mode<synchronous>, transform_indices = @transform_1, window_bounds = array<i64: 48, 4>}, {pipeline_mode = #tpu.pipeline_mode<synchronous>, transform_indices = @transform_2, window_bounds = array<i64: 48, 1>}, {transform_indices = @transform_3, window_bounds = array<i64: 1, 16, 256>}, {transform_indices = @transform_4, window_bounds = array<i64: 1, 32, 256>}]} {
    %c0 = arith.constant 0 : index
    %c0_0 = arith.constant 0 : index
    %c0_1 = arith.constant 0 : index
    %0 = vector.load %arg1[%c0, %c0_0, %c0_1] : memref<1x4x256xf32, #tpu.memory_space<vmem>>, vector<1x4x256xf32>
    %1 = vector.shape_cast %0 : vector<1x4x256xf32> to vector<4x256xf32>
    %c0_2 = arith.constant 0 : index
    %c0_3 = arith.constant 0 : index
    %2 = vector.load %arg2[%c0_2, %c0_3] : memref<48x4xf32, #tpu.memory_space<vmem>>, vector<48x4xf32>
    %cst = arith.constant dense<0.000000e+00> : vector<48x256xf32>
    %3 = tpu.matmul %2, %1, %cst {dimension_numbers = #tpu.dot_dimension_numbers<[1], [0], [0], [1], [0, 0, 1, 1], [], []>} : vector<48x4xf32>, vector<4x256xf32>, vector<48x256xf32> -> vector<48x256xf32>
    %c0_4 = arith.constant 0 : index
    %c0_5 = arith.constant 0 : index
    %4 = vector.load %arg3[%c0_4, %c0_5] : memref<48x1xf32, #tpu.memory_space<vmem>>, vector<48x1xf32>
    %5 = vector.broadcast %4 : vector<48x1xf32> to vector<48x256xf32>
    %6 = arith.addf %3, %5 : vector<48x256xf32>
    %7 = vector.extract_strided_slice %6 {offsets = [0, 0], sizes = [16, 256], strides = [1, 1]} : vector<48x256xf32> to vector<16x256xf32>
    %8 = math.tanh %7 : vector<16x256xf32>
    %cst_6 = arith.constant 1.000000e+00 : f32
    %9 = vector.broadcast %cst_6 : f32 to vector<16x256xf32>
    %10 = arith.addf %8, %9 : vector<16x256xf32>
    %cst_7 = arith.constant 1.6228497 : f32
    %11 = vector.broadcast %cst_7 : f32 to vector<16x256xf32>
    %12 = arith.mulf %10, %11 : vector<16x256xf32>
    %cst_8 = arith.constant -0.424212933 : f32
    %13 = vector.broadcast %cst_8 : f32 to vector<16x256xf32>
    %14 = arith.addf %12, %13 : vector<16x256xf32>
    %c0_9 = arith.constant 0 : index
    %c0_10 = arith.constant 0 : index
    %c0_11 = arith.constant 0 : index
    %15 = vector.load %arg4[%c0_9, %c0_10, %c0_11] : memref<1x16x256xf32, #tpu.memory_space<vmem>>, vector<1x16x256xf32>
    %16 = vector.shape_cast %15 : vector<1x16x256xf32> to vector<16x256xf32>
    %17 = vector.shape_cast %14 : vector<16x256xf32> to vector<1x16x256xf32>
    tpu.vector_store %arg4[%c0_9, %c0_10, %c0_11], %17 {strides = array<i32>} : memref<1x16x256xf32, #tpu.memory_space<vmem>>, vector<1x16x256xf32>,
    %18 = vector.extract_strided_slice %6 {offsets = [16, 0], sizes = [32, 256], strides = [1, 1]} : vector<48x256xf32> to vector<32x256xf32>
    %19 = arith.negf %18 : vector<32x256xf32>
    %20 = math.exp %19 : vector<32x256xf32>
    %cst_12 = arith.constant 1.000000e+00 : f32
    %21 = vector.broadcast %cst_12 : f32 to vector<32x256xf32>
    %22 = arith.addf %21, %20 : vector<32x256xf32>
    %23 = arith.divf %21, %22 : vector<32x256xf32>
    %24 = vector.shape_cast %23 : vector<32x256xf32> to vector<4x8x256xf32>
    %25 = math.exp %24 : vector<4x8x256xf32>
    %cst_13 = arith.constant dense<0.000000e+00> : vector<4x256xf32>
    %26 = vector.multi_reduction <add>, %25, %cst_13 [1] : vector<4x8x256xf32> to vector<4x256xf32>
    %27 = vector.shape_cast %26 : vector<4x256xf32> to vector<4x1x256xf32>
    %28 = tpu.reciprocal %27 {approx = true} : vector<4x1x256xf32> -> vector<4x1x256xf32>
    %29 = vector.broadcast %28 : vector<4x1x256xf32> to vector<4x8x256xf32>
    %30 = arith.mulf %25, %29 : vector<4x8x256xf32>
    %31 = vector.shape_cast %30 : vector<4x8x256xf32> to vector<32x256xf32>
    %c0_14 = arith.constant 0 : index
    %c0_15 = arith.constant 0 : index
    %c0_16 = arith.constant 0 : index
    %32 = vector.load %arg5[%c0_14, %c0_15, %c0_16] : memref<1x32x256xf32, #tpu.memory_space<vmem>>, vector<1x32x256xf32>
    %33 = vector.shape_cast %32 : vector<1x32x256xf32> to vector<32x256xf32>
    %34 = vector.shape_cast %31 : vector<32x256xf32> to vector<1x32x256xf32>
    tpu.vector_store %arg5[%c0_14, %c0_15, %c0_16], %34 {strides = array<i32>} : memref<1x32x256xf32, #tpu.memory_space<vmem>>, vector<1x32x256xf32>,
    return
  }
  func.func @transform_0(%arg0: i32) -> (i32, i32, i32) {
    %c0_i32 = arith.constant 0 : i32
    %c0_i32_0 = arith.constant 0 : i32
    %c0_i32_1 = arith.constant 0 : i32
    return %arg0, %c0_i32, %c0_i32_0 : i32, i32, i32
  }
  func.func @transform_1(%arg0: i32) -> (i32, i32) {
    %c0_i32 = arith.constant 0 : i32
    %c0_i32_0 = arith.constant 0 : i32
    %c0_i32_1 = arith.constant 0 : i32
    return %c0_i32, %c0_i32_0 : i32, i32
  }
  func.func @transform_2(%arg0: i32) -> (i32, i32) {
    %c0_i32 = arith.constant 0 : i32
    %c0_i32_0 = arith.constant 0 : i32
    %c0_i32_1 = arith.constant 0 : i32
    return %c0_i32, %c0_i32_0 : i32, i32
  }
  func.func @transform_3(%arg0: i32) -> (i32, i32, i32) {
    %c0_i32 = arith.constant 0 : i32
    %c0_i32_0 = arith.constant 0 : i32
    %c0_i32_1 = arith.constant 0 : i32
    return %arg0, %c0_i32, %c0_i32_0 : i32, i32, i32
  }
  func.func @transform_4(%arg0: i32) -> (i32, i32, i32) {
    %c0_i32 = arith.constant 0 : i32
    %c0_i32_0 = arith.constant 0 : i32
    %c0_i32_1 = arith.constant 0 : i32
    return %arg0, %c0_i32, %c0_i32_0 : i32, i32, i32
  }
}

</mosaic_0001>

<llo_original>
// kernel: tile.19
$region0: #{tile.19}
  %s0 = inlined_call_operand.vmem [shape: f32[4,8], index: 0, kind: input, shape index: {}]
  %s1 = inlined_call_operand.vmem [shape: f32[32], index: 1, kind: output, shape index: {}]
  $region1: #{tile.19} parent=0
    #allocation0 [shape = 'u8[4096]{0}', space=vmem, size = 0x1000, scoped, tag = 'scoped mem for output reshape']
    #allocation1 [shape = 'u8[4096]{0}', space=vmem, size = 0x1000, scoped, tag = 'scoped mem for input reshape']
    %s3 = ssub.s32 16, 1
    %v4 = vld [vmem:[%s0] sm:%s3]
    %5 = vst [vmem:[#allocation1] sm:%s3] %v4
    %v6 = vld [vmem:[#allocation1] sm:$0x1]
    %vm7 = vcmask 64512
    %8 = vst.msk [vmem:[#allocation0] sm:$0x1] %vm7, %v6
    %s9 = scalar_lea.vmem [#allocation1], 3
    %v10 = vld [vmem:[%s9] sm:$0x1]
    %11 = vrot.lane.b32.xlu0 %v10, 24
    %v12 = vpop.permute.xlu0 %11
    %vm13 = vcmask 261312
    %14 = vst.msk [vmem:[#allocation0] sm:$0x1] %vm13, %v12
    %s15 = scalar_lea.vmem [#allocation1], 2
    %v16 = vld [vmem:[%s15] sm:$0x1]
    %17 = vrot.lane.b32.xlu0 %v16, 16
    %v18 = vpop.permute.xlu0 %17
    %vm19 = vcmask 195712
    %20 = vst.msk [vmem:[#allocation0] sm:$0x1] %vm19, %v18
    %s21 = scalar_lea.vmem [#allocation1], 1
    %v22 = vld [vmem:[%s21] sm:$0x1]
    %23 = vrot.lane.b32.xlu0 %v22, 8
    %v24 = vpop.permute.xlu0 %23
    %vm25 = vcmask 130112
    %26 = vst.msk [vmem:[#allocation0] sm:$0x1] %vm25, %v24
    %s28 = ssub.s32 2, 1
    %v29 = vld [vmem:[#allocation0] sm:%s28]
    %s31 = ssub.s32 2, 1
    %32 = vst [vmem:[%s1] sm:%s31] %v29

// kernel: tile.14
$region0: #{tile.14}
  %s0 = inlined_call_operand.vmem [shape: f32[4,4], index: 0, kind: input, shape index: {}]
  %s1 = inlined_call_operand.vmem [shape: f32[16], index: 1, kind: output, shape index: {}]
  $region1: #{tile.14} parent=0
    #allocation0 [shape = 'u8[4096]{0}', space=vmem, size = 0x1000, scoped, tag = 'scoped mem for output reshape']
    #allocation1 [shape = 'u8[4096]{0}', space=vmem, size = 0x1000, scoped, tag = 'scoped mem for input reshape']
    %s3 = ssub.s32 16, 1
    %v4 = vld [vmem:[%s0] sm:%s3]
    %5 = vst [vmem:[#allocation1] sm:%s3] %v4
    %v6 = vld [vmem:[#allocation1] sm:$0x1]
    %vm7 = vcmask 31744
    %8 = vst.msk [vmem:[#allocation0] sm:$0x1] %vm7, %v6
    %s9 = scalar_lea.vmem [#allocation1], 3
    %v10 = vld [vmem:[%s9] sm:$0x1]
    %11 = vrot.lane.b32.xlu0 %v10, 12
    %v12 = vpop.permute.xlu0 %11
    %vm13 = vcmask 130144
    %14 = vst.msk [vmem:[#allocation0] sm:$0x1] %vm13, %v12
    %s15 = scalar_lea.vmem [#allocation1], 2
    %v16 = vld [vmem:[%s15] sm:$0x1]
    %17 = vrot.lane.b32.xlu0 %v16, 8
    %v18 = vpop.permute.xlu0 %17
    %vm19 = vcmask 97344
    %20 = vst.msk [vmem:[#allocation0] sm:$0x1] %vm19, %v18
    %s21 = scalar_lea.vmem [#allocation1], 1
    %v22 = vld [vmem:[%s21] sm:$0x1]
    %23 = vrot.lane.b32.xlu0 %v22, 4
    %v24 = vpop.permute.xlu0 %23
    %vm25 = vcmask 64544
    %26 = vst.msk [vmem:[#allocation0] sm:$0x1] %vm25, %v24
    %s28 = ssub.s32 2, 1
    %v29 = vld [vmem:[#allocation0] sm:%s28]
    %s31 = ssub.s32 2, 1
    %32 = vst [vmem:[%s1] sm:%s31] %v29

// kernel: tile.13
$region0: #{tile.13}
  #allocation0 [shape = 's32[1]{0}', space=sflag, size = 0x4, scoped, tag = 'scoped memory for tile.13']
  %s0 = inlined_call_operand.vmem [shape: f32[4], index: 0, kind: input, shape index: {}]
  %s1 = inlined_call_operand.vmem [shape: f32[4,4], index: 1, kind: output, shape index: {}]
  // Predicated region
  $region2: #{tile.13} parent=0 // pred_check
    _
  $region3: #{tile.13} parent=0 // pred_check_branch
    %3 = sbr.rel (0) target = $region5
  $region4: #{tile.13} parent=0 // pred_region
    _
  $region5: #{tile.13} parent=0 // pred_fallthru
    _
  %v4 = vld [vmem:[%s0] ss:$0 sm:$0xff]
  %5 = vst [vmem:[%s1] sm:$0xf] %v4

// kernel: tile.18
$region0: #{tile.18}
  #allocation0 [shape = 's32[1]{0}', space=sflag, size = 0x4, scoped, tag = 'scoped memory for tile.18']
  %s0 = inlined_call_operand.vmem [shape: f32[8], index: 0, kind: input, shape index: {}]
  %s1 = inlined_call_operand.vmem [shape: f32[4,8], index: 1, kind: output, shape index: {}]
  // Predicated region
  $region2: #{tile.18} parent=0 // pred_check
    _
  $region3: #{tile.18} parent=0 // pred_check_branch
    %3 = sbr.rel (0) target = $region5
  $region4: #{tile.18} parent=0 // pred_region
    _
  $region5: #{tile.18} parent=0 // pred_fallthru
    _
  %v4 = vld [vmem:[%s0] ss:$0 sm:$0xff]
  %5 = vst [vmem:[%s1] sm:$0xf] %v4

// kernel: generator_forward.1
$region0: #{generator_forward.1}
  #allocation0 [shape = 'u32[]', space=smem, size = 0x4, offset = 0x4, fixed_abs, tag = 'smem constant byte address 0x4 - core index']
  #allocation1 [shape = 'u32[72,128]{1,0:T(1,128)}', space=vmem, size = 0x9000, scoped, tag = 'internal scratch']
  %s0 = inlined_call_operand.vmem [shape: f32[2,4,256], index: 0, kind: input, shape index: {}]
  %s1 = inlined_call_operand.vmem [shape: f32[48,4], index: 1, kind: input, shape index: {}]
  %s2 = inlined_call_operand.vmem [shape: f32[48,1], index: 2, kind: input, shape index: {}]
  %s3 = inlined_call_operand.vmem [shape: f32[2,16,256], index: 3, kind: output, shape index: {0}]
  %s4 = inlined_call_operand.vmem [shape: f32[2,32,256], index: 4, kind: output, shape index: {1}]
  %5 = xla_tuple %s3, %s4
  %s6 = sld [smem:[#allocation0]]
  $region53: #{generator_forward.1} parent=0
    _
  %s8 = ssub.s32 1, %s6
  %s9 = scalar_select 0, %s8, %s6
  loop: start=0, step=1, limit=4
  $region2: #{generator_forward.1} parent=0 // loop_pre_header
    _
  $region3: #{generator_forward.1} parent=0 // loop_header
    %s11 = sphi 0, %s15
    %p12 = scmp.ge.s32.totalorder %s11, 4
    %s21 = sphi 0, %s23
    %s24 = sphi 0, %s21
    %s25 = sphi 0, %s24
    %s41 = sphi 0, %s25
    %s45 = sphi 0, %s45
    %s47 = sphi 0, %s45
    %s48 = sphi 0, %s47
    %s62 = sphi 0, %s48
    %s66 = sphi 0, %s66
    %s68 = sphi 0, %s66
    %s69 = sphi 0, %s68
    %s83 = sphi 0, %s69
    %s89 = sphi 0, %s91
    %s92 = sphi 0, %s89
    %s93 = sphi 0, %s92
    %s109 = sphi 0, %s93
    %s115 = sphi 0, %s117
    %s118 = sphi 0, %s115
    %s119 = sphi 0, %s118
    %s135 = sphi 0, %s119
  $region4: #{generator_forward.1} parent=0 // loop_header_branch
    %14 = sbr.rel (%p12) target = $region8
  $region5: #{generator_forward.1} parent=0 // loop_body
    %s16 = ssub.s32 %s11, 1
    %s17 = ssub.s32 %s11, 2
    %s18 = sadd.s32 %s11, 1
    %s19 = ssub.s32 %s11, %s18
    %p20 = scmp.eq.s32.totalorder %s19, 0
    %s22 = sadd.s32 %s21, 1
    %s23 = scalar_select %p20, %s21, %s22
    %p26 = pneg %p20
    %p27 = scmp.eq.s32.totalorder %s11, 1
    %p28 = por %p26, %p27
    %p29 = scmp.ne.s32.totalorder %s21, %s24
    %p30 = scmp.eq.s32.totalorder %s11, 0
    %p31 = por %p29, %p30
    %p32 = scmp.ne.s32.totalorder %s21, %s24
    %p33 = scmp.eq.s32.totalorder %s16, 1
    %p34 = por %p32, %p33
    %p35 = scmp.ne.s32.totalorder %s24, %s25
    %p36 = scmp.eq.s32.totalorder %s16, 0
    %p37 = por %p35, %p36
    %p38 = scmp.ne.s32.totalorder %s24, %s25
    %p39 = scmp.eq.s32.totalorder %s17, 1
    %p40 = por %p38, %p39
    %p42 = scmp.ne.s32.totalorder %s25, %s41
    %p43 = scmp.eq.s32.totalorder %s17, 0
    %p44 = por %p42, %p43
    %s46 = sadd.s32 %s45, 1
    %p49 = scmp.eq.s32.totalorder %s11, 1
    %p50 = scmp.ne.s32.totalorder %s45, %s47
    %p51 = scmp.eq.s32.totalorder %s11, 0
    %p52 = por %p50, %p51
    %p53 = scmp.ne.s32.totalorder %s45, %s47
    %p54 = scmp.eq.s32.totalorder %s16, 1
    %p55 = por %p53, %p54
    %p56 = scmp.ne.s32.totalorder %s47, %s48
    %p57 = scmp.eq.s32.totalorder %s16, 0
    %p58 = por %p56, %p57
    %p59 = scmp.ne.s32.totalorder %s47, %s48
    %p60 = scmp.eq.s32.totalorder %s17, 1
    %p61 = por %p59, %p60
    %p63 = scmp.ne.s32.totalorder %s48, %s62
    %p64 = scmp.eq.s32.totalorder %s17, 0
    %p65 = por %p63, %p64
    %s67 = sadd.s32 %s66, 1
    %p70 = scmp.eq.s32.totalorder %s11, 1
    %p71 = scmp.ne.s32.totalorder %s66, %s68
    %p72 = scmp.eq.s32.totalorder %s11, 0
    %p73 = por %p71, %p72
    %p74 = scmp.ne.s32.totalorder %s66, %s68
    %p75 = scmp.eq.s32.totalorder %s16, 1
    %p76 = por %p74, %p75
    %p77 = scmp.ne.s32.totalorder %s68, %s69
    %p78 = scmp.eq.s32.totalorder %s16, 0
    %p79 = por %p77, %p78
    %p80 = scmp.ne.s32.totalorder %s68, %s69
    %p81 = scmp.eq.s32.totalorder %s17, 1
    %p82 = por %p80, %p81
    %p84 = scmp.ne.s32.totalorder %s69, %s83
    %p85 = scmp.eq.s32.totalorder %s17, 0
    %p86 = por %p84, %p85
    %s87 = ssub.s32 %s11, %s18
    %p88 = scmp.eq.s32.totalorder %s87, 0
    %s90 = sadd.s32 %s89, 1
    %s91 = scalar_select %p88, %s89, %s90
    %p94 = pneg %p88
    %p95 = scmp.eq.s32.totalorder %s11, 1
    %p96 = por %p94, %p95
    %p97 = scmp.ne.s32.totalorder %s89, %s92
    %p98 = scmp.eq.s32.totalorder %s11, 0
    %p99 = por %p97, %p98
    %p100 = scmp.ne.s32.totalorder %s89, %s92
    %p101 = scmp.eq.s32.totalorder %s16, 1
    %p102 = por %p100, %p101
    %p103 = scmp.ne.s32.totalorder %s92, %s93
    %p104 = scmp.eq.s32.totalorder %s16, 0
    %p105 = por %p103, %p104
    %p106 = scmp.ne.s32.totalorder %s92, %s93
    %p107 = scmp.eq.s32.totalorder %s17, 1
    %p108 = por %p106, %p107
    %p110 = scmp.ne.s32.totalorder %s93, %s109
    %p111 = scmp.eq.s32.totalorder %s17, 0
    %p112 = por %p110, %p111
    %s113 = ssub.s32 %s11, %s18
    %p114 = scmp.eq.s32.totalorder %s113, 0
    %s116 = sadd.s32 %s115, 1
    %s117 = scalar_select %p114, %s115, %s116
    %p120 = pneg %p114
    %p121 = scmp.eq.s32.totalorder %s11, 1
    %p122 = por %p120, %p121
    %p123 = scmp.ne.s32.totalorder %s115, %s118
    %p124 = scmp.eq.s32.totalorder %s11, 0
    %p125 = por %p123, %p124
    %p126 = scmp.ne.s32.totalorder %s115, %s118
    %p127 = scmp.eq.s32.totalorder %s16, 1
    %p128 = por %p126, %p127
    %p129 = scmp.ne.s32.totalorder %s118, %s119
    %p130 = scmp.eq.s32.totalorder %s16, 0
    %p131 = por %p129, %p130
    %p132 = scmp.ne.s32.totalorder %s118, %s119
    %p133 = scmp.eq.s32.totalorder %s17, 1
    %p134 = por %p132, %p133
    %p136 = scmp.ne.s32.totalorder %s119, %s135
    %p137 = scmp.eq.s32.totalorder %s17, 0
    %p138 = por %p136, %p137
    %p139 = scmp.le.s32.totalorder 1, %s11
    %p140 = scmp.lt.s32.totalorder %s11, 3
    %p141 = pnand %p139, %p140
    %p142 = pneg %p141
    // Predicated region
    $region9: #{generator_forward.1} parent=5 // pred_check
      _
    $region10: #{generator_forward.1} parent=5 // pred_check_branch
      %144 = sbr.rel (%p141) target = $region12
    $region11: #{generator_forward.1} parent=5 // pred_region
      %s145 = ssub.s32 %s11, 1
      // Predicated region
      $region13: #{generator_forward.1} parent=11 // pred_check
        %p146 = pneg %p58
      $region14: #{generator_forward.1} parent=11 // pred_check_branch
        %148 = sbr.rel (%p146) target = $region16
      $region15: #{generator_forward.1} parent=11 // pred_region
        _
      $region16: #{generator_forward.1} parent=11 // pred_fallthru
        _
      // Predicated region
      $region17: #{generator_forward.1} parent=11 // pred_check
        %p149 = pneg %p79
      $region18: #{generator_forward.1} parent=11 // pred_check_branch
        %151 = sbr.rel (%p149) target = $region20
      $region19: #{generator_forward.1} parent=11 // pred_region
        _
      $region20: #{generator_forward.1} parent=11 // pred_fallthru
        _
    $region12: #{generator_forward.1} parent=5 // pred_fallthru
      _
    %p152 = scmp.lt.s32.totalorder %s11, 2
    // Predicated region
    $region21: #{generator_forward.1} parent=5 // pred_check
      %p153 = pneg %p152
    $region22: #{generator_forward.1} parent=5 // pred_check_branch
      %155 = sbr.rel (%p153) target = $region24
    $region23: #{generator_forward.1} parent=5 // pred_region
      // Predicated region
      $region25: #{generator_forward.1} parent=23 // pred_check
        %p156 = pneg %p31
      $region26: #{generator_forward.1} parent=23 // pred_check_branch
        %158 = sbr.rel (%p156) target = $region28
      $region27: #{generator_forward.1} parent=23 // pred_region
        %p159 = scmp.lt.s32.totalorder %s11, 1
        %s160 = scalar_select %p159, %s11, 1
        %s161 = smul.addr %s160, 2
        %s162 = smul.addr %s161, 4
        %s163 = scalar_lea.vmem %s0, %s162
      $region28: #{generator_forward.1} parent=23 // pred_fallthru
        _
    $region24: #{generator_forward.1} parent=5 // pred_fallthru
      _
    %p164 = scmp.le.s32.totalorder 1, %s11
    %p165 = scmp.lt.s32.totalorder %s11, 3
    %p166 = pnand %p164, %p165
    %p167 = pneg %p166
    // Predicated region
    $region29: #{generator_forward.1} parent=5 // pred_check
      _
    $region30: #{generator_forward.1} parent=5 // pred_check_branch
      %169 = sbr.rel (%p166) target = $region32
    $region31: #{generator_forward.1} parent=5 // pred_region
      %s170 = ssub.s32 %s11, 1
      %p171 = scmp.lt.s32.totalorder %s16, 1
      %s172 = scalar_select %p171, %s16, 1
      %s173 = smul.addr %s172, 2
      %s174 = smul.addr %s173, 4
      %s175 = scalar_lea.vmem %s0, %s174
      %p176 = pneg %p37
      %p177 = pneg %p34
      %p178 = pneg %p58
      %p179 = pneg %p55
      %p180 = pneg %p79
      %p181 = pneg %p76
      %p182 = pneg %p105
      %p183 = pneg %p102
      %p184 = scmp.lt.s32.totalorder %s16, 1
      %s185 = scalar_select %p184, %s16, 1
      %s186 = smul.addr %s185, 4
      %s187 = smul.addr %s186, 8
      %s188 = scalar_lea.vmem %s3, %s187
      %p189 = pneg %p131
      %p190 = pneg %p128
      %p191 = scmp.lt.s32.totalorder %s16, 1
      %s192 = scalar_select %p191, %s16, 1
      %s193 = smul.addr %s192, 8
      %s194 = smul.addr %s193, 8
      %s195 = scalar_lea.vmem %s4, %s194
      %p196 = scmp.lt.s32.totalorder %s16, 1
      %s197 = scalar_select %p196, %s16, 1
      %s198 = smul.addr %s197, 2
      %s199 = smul.addr %s198, 4
      %s200 = scalar_lea.vmem %s0, %s199
      %p201 = scmp.lt.s32.totalorder %s16, 1
      %s202 = scalar_select %p201, %s16, 1
      %s203 = smul.addr %s202, 4
      %s204 = smul.addr %s203, 8
      %s205 = scalar_lea.vmem %s3, %s204
      %p206 = scmp.lt.s32.totalorder %s16, 1
      %s207 = scalar_select %p206, %s16, 1
      %s208 = smul.addr %s207, 8
      %s209 = smul.addr %s208, 8
      %s210 = scalar_lea.vmem %s4, %s209
      %v211 = vld [vmem:[%s200] sm:$0xff]
      %v212 = vld [vmem:[%s1] sm:$0xff]
      %v213 = vld [vmem:[%s1 + $0x8] sm:$0xff]
      %v214 = vld [vmem:[%s1 + $0x10] sm:$0xff]
      %v215 = vld [vmem:[%s1 + $0x18] sm:$0xff]
      %v216 = vld [vmem:[%s1 + $0x20] sm:$0xff]
      %v217 = vld [vmem:[%s1 + $0x28] sm:$0xff]
      %v218 = vld [vmem:[%s2] sm:$0xff]
      %v219 = vld [vmem:[%s2 + $0x8] sm:$0xff]
      %v220 = vld [vmem:[%s2 + $0x10] sm:$0xff]
      %v221 = vld [vmem:[%s2 + $0x18] sm:$0xff]
      %v222 = vld [vmem:[%s2 + $0x20] sm:$0xff]
      %v223 = vld [vmem:[%s2 + $0x28] sm:$0xff]
      %225 = vset.pattern.permute.xlu0 0
      %226 = vperm.xlu0 %225, %v218
      %v227 = vpop.permute.xlu0 %226
      %230 = vset.pattern.permute.xlu0 0
      %231 = vperm.xlu0 %230, %v219
      %v232 = vpop.permute.xlu0 %231
      %235 = vset.pattern.permute.xlu0 0
      %236 = vperm.xlu0 %235, %v220
      %v237 = vpop.permute.xlu0 %236
      %240 = vset.pattern.permute.xlu0 0
      %241 = vperm.xlu0 %240, %v221
      %v242 = vpop.permute.xlu0 %241
      %245 = vset.pattern.permute.xlu0 0
      %246 = vperm.xlu0 %245, %v222
      %v247 = vpop.permute.xlu0 %246
      %250 = vset.pattern.permute.xlu0 0
      %251 = vperm.xlu0 %250, %v223
      %v252 = vpop.permute.xlu0 %251
      %255 = vst [vmem:[#allocation1] ss:$2 sm:$0xff] %v211
      %v256 = vld.sshfl [vmem:[#allocation1] sm:$0xff pattern:$0x75316420]
      %v257 = vld.sshfl [vmem:[#allocation1 + $0x8] sm:$0xff pattern:$0x75316420]
      %vm258 = vcmask 31744
      %v260 = vsel %vm258, %v212, 0
      %v263 = vsel %vm258, %v213, 0
      %v266 = vsel %vm258, %v214, 0
      %v269 = vsel %vm258, %v215, 0
      %v272 = vsel %vm258, %v216, 0
      %v275 = vsel %vm258, %v217, 0
      %vm277 = vcmask 1043456
      %v278 = vsel %vm277, %v256, 0
      %v280 = vsel %vm277, %v257, 0
      %282 = vmatpush.msra.mxu0 0.0
      %283 = vmatpush.msra.mxu0 0.0
      %284 = vmatpush.msra.mxu0 0.0
      %285 = vmatpush.msra.mxu0 0.0
      %286 = vmatpush.msra.mxu0 0.0
      %287 = vmatpush.msra.mxu0 0.0
      %288 = vmatpush.msra.mxu0 0.0
      %289 = vmatpush.msra.mxu0 0.0
      %290 = vmatpush.msra.mxu0 0.0
      %291 = vmatpush.msra.mxu0 0.0
      %292 = vmatpush.msra.mxu0 0.0
      %293 = vmatpush.msra.mxu0 0.0
      %294 = vmatpush.msra.mxu0 0.0
      %295 = vmatpush.msra.mxu0 0.0
      %296 = vmatpush.msra.mxu0 0.0
      %297 = vmatpush.msra.mxu0 %v278
      %298 = vmatmul.f32.gmra.mxu0 %v260
      %v299 = vpop.f32.mrf.mxu0
      %v300 = vadd.f32 %v227, %v299
      %301 = vmatmul.f32.gmra.mxu0 %v263
      %v302 = vpop.f32.mrf.mxu0
      %v303 = vadd.f32 %v232, %v302
      %304 = vmatmul.f32.gmra.mxu0 %v266
      %v305 = vpop.f32.mrf.mxu0
      %v306 = vadd.f32 %v237, %v305
      %307 = vmatmul.f32.gmra.mxu0 %v269
      %v308 = vpop.f32.mrf.mxu0
      %v309 = vadd.f32 %v242, %v308
      %310 = vmatmul.f32.gmra.mxu0 %v272
      %v311 = vpop.f32.mrf.mxu0
      %v312 = vadd.f32 %v247, %v311
      %313 = vmatmul.f32.gmra.mxu0 %v275
      %v314 = vpop.f32.mrf.mxu0
      %v315 = vadd.f32 %v252, %v314
      %316 = vdwg.mxu0
      %317 = vmatpush.msra.mxu0 0.0
      %318 = vmatpush.msra.mxu0 0.0
      %319 = vmatpush.msra.mxu0 0.0
      %320 = vmatpush.msra.mxu0 0.0
      %321 = vmatpush.msra.mxu0 0.0
      %322 = vmatpush.msra.mxu0 0.0
      %323 = vmatpush.msra.mxu0 0.0
      %324 = vmatpush.msra.mxu0 0.0
      %325 = vmatpush.msra.mxu0 0.0
      %326 = vmatpush.msra.mxu0 0.0
      %327 = vmatpush.msra.mxu0 0.0
      %328 = vmatpush.msra.mxu0 0.0
      %329 = vmatpush.msra.mxu0 0.0
      %330 = vmatpush.msra.mxu0 0.0
      %331 = vmatpush.msra.mxu0 0.0
      %332 = vmatpush.msra.mxu0 %v280
      %333 = vmatmul.f32.gmra.mxu0 %v260
      %v334 = vpop.f32.mrf.mxu0
      %v335 = vadd.f32 %v227, %v334
      %336 = vmatmul.f32.gmra.mxu0 %v263
      %v337 = vpop.f32.mrf.mxu0
      %v338 = vadd.f32 %v232, %v337
      %339 = vmatmul.f32.gmra.mxu0 %v266
      %v340 = vpop.f32.mrf.mxu0
      %v341 = vadd.f32 %v237, %v340
      %342 = vmatmul.f32.gmra.mxu0 %v269
      %v343 = vpop.f32.mrf.mxu0
      %v344 = vadd.f32 %v242, %v343
      %345 = vmatmul.f32.gmra.mxu0 %v272
      %v346 = vpop.f32.mrf.mxu0
      %v347 = vadd.f32 %v247, %v346
      %348 = vmatmul.f32.gmra.mxu0 %v275
      %v349 = vpop.f32.mrf.mxu0
      %v350 = vadd.f32 %v252, %v349
      %351 = vdwg.mxu0
      %v352 = vtanh.pop %v300
      %v353 = vtanh.pop %v335
      %v354 = vtanh.pop %v303
      %v355 = vtanh.pop %v338
      %v356 = vadd.f32 %v352, 1.0
      %v357 = vadd.f32 %v353, 1.0
      %v358 = vadd.f32 %v354, 1.0
      %v359 = vadd.f32 %v355, 1.0
      %v360 = vmul.f32 %v356, 1.6228497
      %v361 = vmul.f32 %v357, 1.6228497
      %v362 = vmul.f32 %v358, 1.6228497
      %v363 = vmul.f32 %v359, 1.6228497
      %v364 = vadd.f32 %v360, -0.42421293
      %v365 = vadd.f32 %v361, -0.42421293
      %v366 = vadd.f32 %v362, -0.42421293
      %v367 = vadd.f32 %v363, -0.42421293
      %368 = vst [vmem:[%s205] sm:$0xff] %v364
      %369 = vst [vmem:[%s205 + $0x8] sm:$0xff] %v365
      %370 = vst [vmem:[%s205 + $0x10] sm:$0xff] %v366
      %371 = vst [vmem:[%s205 + $0x18] sm:$0xff] %v367
      %v372 = vxor.u32 %v306, 2147483648
      %v373 = vxor.u32 %v341, 2147483648
      %v374 = vxor.u32 %v309, 2147483648
      %v375 = vxor.u32 %v344, 2147483648
      %v376 = vxor.u32 %v312, 2147483648
      %v377 = vxor.u32 %v347, 2147483648
      %v378 = vxor.u32 %v315, 2147483648
      %v379 = vxor.u32 %v350, 2147483648
      %v380 = vmul.f32 %v372, 1.442695
      %v381 = vpow.pop %v380
      %v382 = vmul.f32 %v373, 1.442695
      %v383 = vpow.pop %v382
      %v384 = vmul.f32 %v374, 1.442695
      %v385 = vpow.pop %v384
      %v386 = vmul.f32 %v375, 1.442695
      %v387 = vpow.pop %v386
      %v388 = vmul.f32 %v376, 1.442695
      %v389 = vpow.pop %v388
      %v390 = vmul.f32 %v377, 1.442695
      %v391 = vpow.pop %v390
      %v392 = vmul.f32 %v378, 1.442695
      %v393 = vpow.pop %v392
      %v394 = vmul.f32 %v379, 1.442695
      %v395 = vpow.pop %v394
      %v396 = vadd.f32 %v381, 1.0
      %v397 = vadd.f32 %v383, 1.0
      %v398 = vadd.f32 %v385, 1.0
      %v399 = vadd.f32 %v387, 1.0
      %v400 = vadd.f32 %v389, 1.0
      %v401 = vadd.f32 %v391, 1.0
      %v402 = vadd.f32 %v393, 1.0
      %v403 = vadd.f32 %v395, 1.0
      %v404 = vrcp.pop %v396
      %v405 = vmul.f32 %v396, %v404
      %v406 = vsub.f32 1.0, %v405
      %v407 = vmul.f32 %v404, %v406
      %v408 = vadd.f32 %v404, %v407
      %vm409 = vweird.f32 %v396
      %vm410 = vweird.f32 %v404
      %vm411 = vmor %vm409, %vm410
      %v412 = vsel %vm411, %v404, %v408
      %v413 = vand.u32 2147483647, %v396
      %vm414 = vcmp.eq.f32.partialorder %v413, 8.507059e+37
      %v415 = vand.u32 %v396, 2147483648
      %v416 = vor.u32 1.1754944e-38, %v415
      %v417 = vsel %vm414, %v416, %v412
      %v418 = vmul.f32 1.0, %v417
      %v419 = vrcp.pop %v397
      %v420 = vmul.f32 %v397, %v419
      %v421 = vsub.f32 1.0, %v420
      %v422 = vmul.f32 %v419, %v421
      %v423 = vadd.f32 %v419, %v422
      %vm424 = vweird.f32 %v397
      %vm425 = vweird.f32 %v419
      %vm426 = vmor %vm424, %vm425
      %v427 = vsel %vm426, %v419, %v423
      %v428 = vand.u32 2147483647, %v397
      %vm429 = vcmp.eq.f32.partialorder %v428, 8.507059e+37
      %v430 = vand.u32 %v397, 2147483648
      %v431 = vor.u32 1.1754944e-38, %v430
      %v432 = vsel %vm429, %v431, %v427
      %v433 = vmul.f32 1.0, %v432
      %v434 = vrcp.pop %v398
      %v435 = vmul.f32 %v398, %v434
      %v436 = vsub.f32 1.0, %v435
      %v437 = vmul.f32 %v434, %v436
      %v438 = vadd.f32 %v434, %v437
      %vm439 = vweird.f32 %v398
      %vm440 = vweird.f32 %v434
      %vm441 = vmor %vm439, %vm440
      %v442 = vsel %vm441, %v434, %v438
      %v443 = vand.u32 2147483647, %v398
      %vm444 = vcmp.eq.f32.partialorder %v443, 8.507059e+37
      %v445 = vand.u32 %v398, 2147483648
      %v446 = vor.u32 1.1754944e-38, %v445
      %v447 = vsel %vm444, %v446, %v442
      %v448 = vmul.f32 1.0, %v447
      %v449 = vrcp.pop %v399
      %v450 = vmul.f32 %v399, %v449
      %v451 = vsub.f32 1.0, %v450
      %v452 = vmul.f32 %v449, %v451
      %v453 = vadd.f32 %v449, %v452
      %vm454 = vweird.f32 %v399
      %vm455 = vweird.f32 %v449
      %vm456 = vmor %vm454, %vm455
      %v457 = vsel %vm456, %v449, %v453
      %v458 = vand.u32 2147483647, %v399
      %vm459 = vcmp.eq.f32.partialorder %v458, 8.507059e+37
      %v460 = vand.u32 %v399, 2147483648
      %v461 = vor.u32 1.1754944e-38, %v460
      %v462 = vsel %vm459, %v461, %v457
      %v463 = vmul.f32 1.0, %v462
      %v464 = vrcp.pop %v400
      %v465 = vmul.f32 %v400, %v464
      %v466 = vsub.f32 1.0, %v465
      %v467 = vmul.f32 %v464, %v466
      %v468 = vadd.f32 %v464, %v467
      %vm469 = vweird.f32 %v400
      %vm470 = vweird.f32 %v464
      %vm471 = vmor %vm469, %vm470
      %v472 = vsel %vm471, %v464, %v468
      %v473 = vand.u32 2147483647, %v400
      %vm474 = vcmp.eq.f32.partialorder %v473, 8.507059e+37
      %v475 = vand.u32 %v400, 2147483648
      %v476 = vor.u32 1.1754944e-38, %v475
      %v477 = vsel %vm474, %v476, %v472
      %v478 = vmul.f32 1.0, %v477
      %v479 = vrcp.pop %v401
      %v480 = vmul.f32 %v401, %v479
      %v481 = vsub.f32 1.0, %v480
      %v482 = vmul.f32 %v479, %v481
      %v483 = vadd.f32 %v479, %v482
      %vm484 = vweird.f32 %v401
      %vm485 = vweird.f32 %v479
      %vm486 = vmor %vm484, %vm485
      %v487 = vsel %vm486, %v479, %v483
      %v488 = vand.u32 2147483647, %v401
      %vm489 = vcmp.eq.f32.partialorder %v488, 8.507059e+37
      %v490 = vand.u32 %v401, 2147483648
      %v491 = vor.u32 1.1754944e-38, %v490
      %v492 = vsel %vm489, %v491, %v487
      %v493 = vmul.f32 1.0, %v492
      %v494 = vrcp.pop %v402
      %v495 = vmul.f32 %v402, %v494
      %v496 = vsub.f32 1.0, %v495
      %v497 = vmul.f32 %v494, %v496
      %v498 = vadd.f32 %v494, %v497
      %vm499 = vweird.f32 %v402
      %vm500 = vweird.f32 %v494
      %vm501 = vmor %vm499, %vm500
      %v502 = vsel %vm501, %v494, %v498
      %v503 = vand.u32 2147483647, %v402
      %vm504 = vcmp.eq.f32.partialorder %v503, 8.507059e+37
      %v505 = vand.u32 %v402, 2147483648
      %v506 = vor.u32 1.1754944e-38, %v505
      %v507 = vsel %vm504, %v506, %v502
      %v508 = vmul.f32 1.0, %v507
      %v509 = vrcp.pop %v403
      %v510 = vmul.f32 %v403, %v509
      %v511 = vsub.f32 1.0, %v510
      %v512 = vmul.f32 %v509, %v511
      %v513 = vadd.f32 %v509, %v512
      %vm514 = vweird.f32 %v403
      %vm515 = vweird.f32 %v509
      %vm516 = vmor %vm514, %vm515
      %v517 = vsel %vm516, %v509, %v513
      %v518 = vand.u32 2147483647, %v403
      %vm519 = vcmp.eq.f32.partialorder %v518, 8.507059e+37
      %v520 = vand.u32 %v403, 2147483648
      %v521 = vor.u32 1.1754944e-38, %v520
      %v522 = vsel %vm519, %v521, %v517
      %v523 = vmul.f32 1.0, %v522
      %v524 = vmul.f32 %v418, 1.442695
      %v525 = vpow.pop %v524
      %v526 = vmul.f32 %v433, 1.442695
      %v527 = vpow.pop %v526
      %v528 = vmul.f32 %v448, 1.442695
      %v529 = vpow.pop %v528
      %v530 = vmul.f32 %v463, 1.442695
      %v531 = vpow.pop %v530
      %v532 = vmul.f32 %v478, 1.442695
      %v533 = vpow.pop %v532
      %v534 = vmul.f32 %v493, 1.442695
      %v535 = vpow.pop %v534
      %v536 = vmul.f32 %v508, 1.442695
      %v537 = vpow.pop %v536
      %v538 = vmul.f32 %v523, 1.442695
      %v539 = vpow.pop %v538
      %v540 = vrot.slane %v525, 4
      %v541 = vadd.f32 %v525, %v540
      %v542 = vrot.slane %v541, 2
      %v543 = vadd.f32 %v541, %v542
      %v544 = vrot.slane %v543, 1
      %v545 = vadd.f32 %v543, %v544
      %v546 = vrot.slane %v527, 4
      %v547 = vadd.f32 %v527, %v546
      %v548 = vrot.slane %v547, 2
      %v549 = vadd.f32 %v547, %v548
      %v550 = vrot.slane %v549, 1
      %v551 = vadd.f32 %v549, %v550
      %v552 = vrot.slane %v529, 4
      %v553 = vadd.f32 %v529, %v552
      %v554 = vrot.slane %v553, 2
      %v555 = vadd.f32 %v553, %v554
      %v556 = vrot.slane %v555, 1
      %v557 = vadd.f32 %v555, %v556
      %v558 = vrot.slane %v531, 4
      %v559 = vadd.f32 %v531, %v558
      %v560 = vrot.slane %v559, 2
      %v561 = vadd.f32 %v559, %v560
      %v562 = vrot.slane %v561, 1
      %v563 = vadd.f32 %v561, %v562
      %v564 = vrot.slane %v533, 4
      %v565 = vadd.f32 %v533, %v564
      %v566 = vrot.slane %v565, 2
      %v567 = vadd.f32 %v565, %v566
      %v568 = vrot.slane %v567, 1
      %v569 = vadd.f32 %v567, %v568
      %v570 = vrot.slane %v535, 4
      %v571 = vadd.f32 %v535, %v570
      %v572 = vrot.slane %v571, 2
      %v573 = vadd.f32 %v571, %v572
      %v574 = vrot.slane %v573, 1
      %v575 = vadd.f32 %v573, %v574
      %v576 = vrot.slane %v537, 4
      %v577 = vadd.f32 %v537, %v576
      %v578 = vrot.slane %v577, 2
      %v579 = vadd.f32 %v577, %v578
      %v580 = vrot.slane %v579, 1
      %v581 = vadd.f32 %v579, %v580
      %v582 = vrot.slane %v539, 4
      %v583 = vadd.f32 %v539, %v582
      %v584 = vrot.slane %v583, 2
      %v585 = vadd.f32 %v583, %v584
      %v586 = vrot.slane %v585, 1
      %v587 = vadd.f32 %v585, %v586
      %v588 = vrcp.pop %v545
      %v589 = vrcp.pop %v551
      %v590 = vrcp.pop %v557
      %v591 = vrcp.pop %v563
      %v592 = vrcp.pop %v569
      %v593 = vrcp.pop %v575
      %v594 = vrcp.pop %v581
      %v595 = vrcp.pop %v587
      %v596 = vmul.f32 %v525, %v588
      %v597 = vmul.f32 %v527, %v589
      %v598 = vmul.f32 %v529, %v590
      %v599 = vmul.f32 %v531, %v591
      %v600 = vmul.f32 %v533, %v592
      %v601 = vmul.f32 %v535, %v593
      %v602 = vmul.f32 %v537, %v594
      %v603 = vmul.f32 %v539, %v595
      %604 = vst [vmem:[%s210] sm:$0xff] %v596
      %605 = vst [vmem:[%s210 + $0x8] sm:$0xff] %v597
      %606 = vst [vmem:[%s210 + $0x10] sm:$0xff] %v598
      %607 = vst [vmem:[%s210 + $0x18] sm:$0xff] %v599
      %608 = vst [vmem:[%s210 + $0x20] sm:$0xff] %v600
      %609 = vst [vmem:[%s210 + $0x28] sm:$0xff] %v601
      %610 = vst [vmem:[%s210 + $0x30] sm:$0xff] %v602
      %611 = vst [vmem:[%s210 + $0x38] sm:$0xff] %v603
      %p612 = scmp.lt.s32.totalorder %s16, 1
      %s613 = scalar_select %p612, %s16, 1
      %s614 = smul.addr %s613, 4
      %s615 = smul.addr %s614, 8
      %s616 = scalar_lea.vmem %s3, %s615
      %p617 = scmp.lt.s32.totalorder %s16, 1
      %s618 = scalar_select %p617, %s16, 1
      %s619 = smul.addr %s618, 8
      %s620 = smul.addr %s619, 8
      %s621 = scalar_lea.vmem %s4, %s620
      // Predicated region
      $region33: #{generator_forward.1} parent=31 // pred_check
        %p622 = pneg %p102
      $region34: #{generator_forward.1} parent=31 // pred_check_branch
        %624 = sbr.rel (%p622) target = $region36
      $region35: #{generator_forward.1} parent=31 // pred_region
        _
      $region36: #{generator_forward.1} parent=31 // pred_fallthru
        _
      // Predicated region
      $region37: #{generator_forward.1} parent=31 // pred_check
        %p625 = pneg %p128
      $region38: #{generator_forward.1} parent=31 // pred_check_branch
        %627 = sbr.rel (%p625) target = $region40
      $region39: #{generator_forward.1} parent=31 // pred_region
        _
      $region40: #{generator_forward.1} parent=31 // pred_fallthru
        _
    $region32: #{generator_forward.1} parent=5 // pred_fallthru
      _
    %p628 = scmp.le.s32.totalorder 2, %s11
    // Predicated region
    $region41: #{generator_forward.1} parent=5 // pred_check
      %p629 = pneg %p628
    $region42: #{generator_forward.1} parent=5 // pred_check_branch
      %631 = sbr.rel (%p629) target = $region44
    $region43: #{generator_forward.1} parent=5 // pred_region
      %s632 = ssub.s32 %s11, 2
      // Predicated region
      $region45: #{generator_forward.1} parent=43 // pred_check
        %p633 = pneg %p108
      $region46: #{generator_forward.1} parent=43 // pred_check_branch
        %635 = sbr.rel (%p633) target = $region48
      $region47: #{generator_forward.1} parent=43 // pred_region
        %p636 = scmp.lt.s32.totalorder %s17, 1
        %s637 = scalar_select %p636, %s17, 1
        %s638 = smul.addr %s637, 4
        %s639 = smul.addr %s638, 8
        %s640 = scalar_lea.vmem %s3, %s639
      $region48: #{generator_forward.1} parent=43 // pred_fallthru
        _
      // Predicated region
      $region49: #{generator_forward.1} parent=43 // pred_check
        %p641 = pneg %p134
      $region50: #{generator_forward.1} parent=43 // pred_check_branch
        %643 = sbr.rel (%p641) target = $region52
      $region51: #{generator_forward.1} parent=43 // pred_region
        %p644 = scmp.lt.s32.totalorder %s17, 1
        %s645 = scalar_select %p644, %s17, 1
        %s646 = smul.addr %s645, 8
        %s647 = smul.addr %s646, 8
        %s648 = scalar_lea.vmem %s4, %s647
      $region52: #{generator_forward.1} parent=43 // pred_fallthru
        _
    $region44: #{generator_forward.1} parent=5 // pred_fallthru
      _
  $region6: #{generator_forward.1} parent=0 // loop_footer
    %s15 = sadd.s32 1, %s11
  $region7: #{generator_forward.1} parent=0 // loop_footer_branch
    %10 = sbr.rel target = $region3
  $region8: #{generator_forward.1} parent=0 // loop_exit
    _

</llo_original>
